<compile_context>
chip_gen: v6e
topology: v6e:2x2x1
jax: 0.10.0
libtpu: 0.0.40
codegen_flags: <defaults>
</compile_context>

<pallas_src>
import functools
import math

import jax
import jax.numpy as jnp
from jax.experimental import pallas as pl
from jax.experimental.pallas import tpu as pltpu


_MAX_PACK_WIDTH = 1024   # cap on lcm(C, 128): projection matrix <= 2 MiB bf16


def _round_up(x, m):
    return ((x + m - 1) // m) * m


def _vmem_capacity_bytes():
    """Per-core VMEM capacity; conservative v7x fallback if the query fails."""
    try:
        cap = int(pltpu.get_tpu_info().vmem_capacity_bytes)
        if cap > 0:
            return cap
    except Exception:
        pass
    return 64 << 20


def _block_budget_bytes():
    # Budget for one block's f32 working set: ~capacity/16 -> 4 MiB on v7x,
    # 8 MiB on v5e/v6e.  Keeps per-grid-step pipeline overhead (~0.35 us)
    # small relative to the block's HBM time on every generation.
    cap = _vmem_capacity_bytes()
    return max(2 << 20, min(8 << 20, cap // 16))


def _mosaic_params(semantics, in_block_bytes, out_block_bytes, f32_block_bytes,
                   extra_bytes=0):
    cap = _vmem_capacity_bytes()
    # 2x double-buffered input + output, generous allowance for the kernel's
    # elementwise f32 temporaries, constants (projection/weight/bias), slack.
    need = (2 * in_block_bytes + 2 * out_block_bytes + 8 * f32_block_bytes
            + extra_bytes + (2 << 20))
    limit = int(min(max(need, 32 << 20), cap - (8 << 20)))
    return pltpu.CompilerParams(dimension_semantics=semantics,
                                vmem_limit_bytes=limit)


def _pick_tile_rows(rows, row_elems, itemsize):
    """Rows per block.

    Sized so the f32 working block fits the generation-aware budget, rounded
    to the dtype's sublane packing (8 f32 / 16 bf16 / 32 int8), and aiming for
    >= 4 grid steps on large inputs so both v7x TensorCores get >= 2 each.
    """
    sub = max(8, 32 // max(itemsize, 1))
    budget = _block_budget_bytes()
    t = max(sub, (budget // max(row_elems * 4, 1)) // sub * sub)
    quarter = _round_up(max((rows + 3) // 4, sub), sub)
    return min(t, quarter, _round_up(rows, sub))


# ---------------------------------------------------------------------------
# Kernels
# ---------------------------------------------------------------------------

def _ln_packed_kernel(x_ref, p_ref, w_ref, b_ref, o_ref, *, eps, inv_c):
    # x_ref: (T, W) -- `pack = W // C` logical rows of C channels per
    #        lane-dense W-wide physical row (W = lcm(C, 128)).
    # p_ref: (W, W) bf16 block-diagonal 0/1 mask: x @ p == each logical row's
    #        sum broadcast back over that row's C lanes.  The 1/C scale is
    #        applied in f32 afterwards so it is exact for any C.
    x = x_ref[...].astype(jnp.float32)
    p = p_ref[...]

    def seg_sum(v):
        # bf16 hi/lo split -> two MXU matmuls with f32 accumulation keeps the
        # segmented reduction at ~f32 accuracy.
        hi = v.astype(jnp.bfloat16)
        lo = (v - hi.astype(jnp.float32)).astype(jnp.bfloat16)
        return (jnp.dot(hi, p, preferred_element_type=jnp.float32) +
                jnp.dot(lo, p, preferred_element_type=jnp.float32))

    mean = seg_sum(x) * inv_c
    xc = x - mean
    var = seg_sum(xc * xc) * inv_c               # biased variance (matches torch)
    inv = jax.lax.rsqrt(var + eps)
    o_ref[...] = (xc * (inv * w_ref[...]) + b_ref[...]).astype(o_ref.dtype)


def _ln_rows_kernel(x_ref, w_ref, b_ref, o_ref, *, eps):
    # Lane-dense fallback (C % 128 == 0, or C too large to pack): normalize
    # each row of a (T, C) tile over its last dim.
    x = x_ref[...].astype(jnp.float32)
    mean = jnp.mean(x, axis=-1, keepdims=True)
    xc = x - mean
    var = jnp.mean(xc * xc, axis=-1, keepdims=True)
    inv = jax.lax.rsqrt(var + eps)
    o_ref[...] = (xc * (inv * w_ref[...]) + b_ref[...]).astype(o_ref.dtype)


def _ln_cfirst_kernel(x_ref, w_ref, b_ref, o_ref, *, eps):
    # x_ref: (C, T_hw) slice of the NCHW tensor; reduce over the C (sublane)
    # axis; lanes carry the spatial axis.  Partial lane tails are safe because
    # lanes are independent and OOB lanes are never stored.
    x = x_ref[...].astype(jnp.float32)
    mean = jnp.mean(x, axis=0, keepdims=True)            # (1, T_hw)
    xc = x - mean
    var = jnp.mean(xc * xc, axis=0, keepdims=True)
    inv = jax.lax.rsqrt(var + eps)
    o_ref[...] = (xc * inv * w_ref[...] + b_ref[...]).astype(o_ref.dtype)


# ---------------------------------------------------------------------------
# Wrappers
# ---------------------------------------------------------------------------

def _ln_lastdim_packed(x2d, weight, bias, eps, pack, W):
    R, C = x2d.shape
    Rp = -(-R // pack)
    R_pad = Rp * pack
    xr = x2d
    if R_pad != R:
        # <= pack-1 zero rows: keeps the lane-dense packed path instead of the
        # lane-sparse row fallback for unlucky leading sizes.
        xr = jnp.pad(x2d, ((0, R_pad - R), (0, 0)))
    xp = xr.reshape(Rp, W)                               # contiguous -> free

    p = jnp.kron(jnp.eye(pack, dtype=jnp.float32),
                 jnp.ones((C, C), jnp.float32)).astype(jnp.bfloat16)
    w = jnp.tile(weight.astype(jnp.float32), pack).reshape(1, W)
    b = jnp.tile(bias.astype(jnp.float32), pack).reshape(1, W)

    itemsize = x2d.dtype.itemsize
    tile = _pick_tile_rows(Rp, W, itemsize)
    grid = (pl.cdiv(Rp, tile),)
    blk = tile * W
    params = _mosaic_params(
        ("parallel",), blk * itemsize, blk * itemsize, blk * 4,
        extra_bytes=2 * (W * W * 2 + 4 * W * 4))
    out = pl.pallas_call(
        functools.partial(_ln_packed_kernel, eps=eps, inv_c=1.0 / C),
        out_shape=jax.ShapeDtypeStruct((Rp, W), x2d.dtype),
        grid_spec=pltpu.PrefetchScalarGridSpec(
            num_scalar_prefetch=0,
            grid=grid,
            in_specs=[
                pl.BlockSpec((tile, W), lambda i: (i, 0)),
                pl.BlockSpec((W, W), lambda i: (0, 0)),
                pl.BlockSpec((1, W), lambda i: (0, 0)),
                pl.BlockSpec((1, W), lambda i: (0, 0)),
            ],
            out_specs=pl.BlockSpec((tile, W), lambda i: (i, 0)),
        ),
        compiler_params=params,
    )(xp, p, w, b)
    y = out.reshape(R_pad, C)
    if R_pad != R:
        y = y[:R]
    return y


def _ln_lastdim_rows(x2d, weight, bias, eps):
    R, C = x2d.shape
    w = weight.astype(jnp.float32).reshape(1, C)
    b = bias.astype(jnp.float32).reshape(1, C)
    itemsize = x2d.dtype.itemsize
    tile = _pick_tile_rows(R, C, itemsize)
    grid = (pl.cdiv(R, tile),)
    blk = tile * C
    params = _mosaic_params(("parallel",), blk * itemsize, blk * itemsize,
                            blk * 4, extra_bytes=4 * C * 4 * 2)
    out = pl.pallas_call(
        functools.partial(_ln_rows_kernel, eps=eps),
        out_shape=jax.ShapeDtypeStruct((R, C), x2d.dtype),
        grid_spec=pltpu.PrefetchScalarGridSpec(
            num_scalar_prefetch=0,
            grid=grid,
            in_specs=[
                pl.BlockSpec((tile, C), lambda i: (i, 0)),
                pl.BlockSpec((1, C), lambda i: (0, 0)),
                pl.BlockSpec((1, C), lambda i: (0, 0)),
            ],
            out_specs=pl.BlockSpec((tile, C), lambda i: (i, 0)),
        ),
        compiler_params=params,
    )(x2d, w, b)
    return out


def _ln_channels_first(x, weight, bias, eps):
    N, C, H, Wd = x.shape
    HW = H * Wd
    x3 = x.reshape(N, C, HW)                             # free, contiguous
    w = weight.astype(jnp.float32).reshape(C, 1)
    b = bias.astype(jnp.float32).reshape(C, 1)
    itemsize = x.dtype.itemsize
    budget = _block_budget_bytes()
    if HW >= 128:
        # Lane tiles in multiples of 128; partial tail blocks are safe because
        # the reduction is over the sublane (C) axis only.
        tile_hw = max(128, (budget // max(C * 4, 1)) // 128 * 128)
        if N == 1:                                       # keep >= 2 grid steps
            tile_hw = min(tile_hw, _round_up(max((HW + 1) // 2, 128), 128))
        tile_hw = min(tile_hw, _round_up(HW, 128))
    else:
        tile_hw = HW                                     # full-extent lane dim
    grid = (N, pl.cdiv(HW, tile_hw))
    blk = C * tile_hw
    params = _mosaic_params(("parallel", "parallel"),
                            blk * itemsize, blk * itemsize, blk * 4,
                            extra_bytes=4 * C * 4 * 2)
    out = pl.pallas_call(
        functools.partial(_ln_cfirst_kernel, eps=eps),
        out_shape=jax.ShapeDtypeStruct((N, C, HW), x.dtype),
        grid_spec=pltpu.PrefetchScalarGridSpec(
            num_scalar_prefetch=0,
            grid=grid,
            in_specs=[
                pl.BlockSpec((None, C, tile_hw), lambda n, j: (n, 0, j)),
                pl.BlockSpec((C, 1), lambda n, j: (0, 0)),
                pl.BlockSpec((C, 1), lambda n, j: (0, 0)),
            ],
            out_specs=pl.BlockSpec((None, C, tile_hw), lambda n, j: (n, 0, j)),
        ),
        compiler_params=params,
    )(x3, w, b)
    return out.reshape(N, C, H, Wd)


def layer_norm(x, weight, bias, eps=1e-6, data_format="channels_last"):
    """Matches the PyTorch LayerNorm module's forward.

    channels_last : x is (..., C), normalize over the last dim.
    channels_first: x is (N, C, H, W), normalize over dim 1 (no transposes).
    """
    if data_format == "channels_last":
        C = x.shape[-1]
        lead = x.shape[:-1]
        R = 1
        for d in lead:
            R *= d
        x2d = x.reshape(R, C)
        W = (C * 128) // math.gcd(C, 128)                # lcm(C, 128)
        if C % 128 != 0 and W <= _MAX_PACK_WIDTH and R > 0:
            y2d = _ln_lastdim_packed(x2d, weight, bias, eps, W // C, W)
        else:
            y2d = _ln_lastdim_rows(x2d, weight, bias, eps)
        return y2d.reshape(*lead, C)
    elif data_format == "channels_first":
        return _ln_channels_first(x, weight, bias, eps)
    else:
        raise NotImplementedError


# ---------------------------------------------------------------------------
# Reference + test
# ---------------------------------------------------------------------------

def _reference(x, weight, bias, eps, data_format):
    if data_format == "channels_last":
        u = jnp.mean(x, axis=-1, keepdims=True)
        s = jnp.mean((x - u) ** 2, axis=-1, keepdims=True)
        return (x - u) / jnp.sqrt(s + eps) * weight + bias
    else:
        u = jnp.mean(x, axis=1, keepdims=True)
        s = jnp.mean((x - u) ** 2, axis=1, keepdims=True)
        xn = (x - u) / jnp.sqrt(s + eps)
        return weight[:, None, None] * xn + bias[:, None, None]


if __name__ == "__main__":
    key = jax.random.PRNGKey(0)
    keys = jax.random.split(key, 8)
    eps = 1e-6

    C = 32
    w32 = 1.0 + 0.1 * jax.random.normal(keys[2], (C,), dtype=jnp.float32)
    b32 = 0.1 * jax.random.normal(keys[3], (C,), dtype=jnp.float32)

    # channels_first, NCHW, HW a multiple of 128 (tiled lane path)
    x_cf = jax.random.normal(keys[0], (2, C, 16, 16), dtype=jnp.float32)
    y_cf = jax.block_until_ready(layer_norm(x_cf, w32, b32, eps, "channels_first"))
    assert y_cf.shape == x_cf.shape
    assert jnp.allclose(y_cf, _reference(x_cf, w32, b32, eps, "channels_first"),
                        atol=1e-5, rtol=1e-5)

    # channels_first, HW < 128 (full-extent lane block)
    x_cf2 = jax.random.normal(keys[4], (2, C, 10, 12), dtype=jnp.float32)
    y_cf2 = jax.block_until_ready(layer_norm(x_cf2, w32, b32, eps, "channels_first"))
    assert jnp.allclose(y_cf2, _reference(x_cf2, w32, b32, eps, "channels_first"),
                        atol=1e-5, rtol=1e-5)

    # channels_first, HW >= 128 and not a multiple of 128 (partial lane tail)
    x_cf3 = jax.random.normal(keys[5], (2, C, 10, 13), dtype=jnp.float32)
    y_cf3 = jax.block_until_ready(layer_norm(x_cf3, w32, b32, eps, "channels_first"))
    assert jnp.allclose(y_cf3, _reference(x_cf3, w32, b32, eps, "channels_first"),
                        atol=1e-5, rtol=1e-5)

    # channels_last, C=32 -> packed kernel (W=128, 4 rows per 128 lanes)
    x_cl = jax.random.normal(keys[1], (2, 16, 16, C), dtype=jnp.float32)
    y_cl = jax.block_until_ready(layer_norm(x_cl, w32, b32, eps, "channels_last"))
    assert y_cl.shape == x_cl.shape
    assert jnp.allclose(y_cl, _reference(x_cl, w32, b32, eps, "channels_last"),
                        atol=1e-4, rtol=1e-4)

    # channels_last, bf16 activations (sublane packing = 16 rows)
    x_bf32 = jax.random.normal(keys[6], (2, 8, 8, C), dtype=jnp.float32)
    x_bf = x_bf32.astype(jnp.bfloat16)
    y_bf = jax.block_until_ready(layer_norm(x_bf, w32, b32, eps, "channels_last"))
    assert y_bf.dtype == jnp.bfloat16
    ref_bf = _reference(x_bf.astype(jnp.float32), w32, b32, eps, "channels_last")
    assert jnp.allclose(y_bf.astype(jnp.float32), ref_bf, atol=2e-2, rtol=2e-2)

    # channels_last, C=48 -> lcm packing (W=384); R=126 not a multiple of
    # pack=8, so the <=pack-1 row padding path is exercised.
    C2 = 48
    w48 = 1.0 + 0.1 * jax.random.normal(keys[7], (C2,), dtype=jnp.float32)
    b48 = 0.1 * jax.random.normal(keys[3], (C2,), dtype=jnp.float32)
    x_cl2 = jax.random.normal(keys[0], (2, 7, 9, C2), dtype=jnp.float32)
    y_cl2 = jax.block_until_ready(layer_norm(x_cl2, w48, b48, eps, "channels_last"))
    assert y_cl2.shape == x_cl2.shape
    assert jnp.allclose(y_cl2, _reference(x_cl2, w48, b48, eps, "channels_last"),
                        atol=1e-4, rtol=1e-4)

    # channels_last, C=128 (already lane-dense) -> row kernel
    C3 = 128
    w128 = jnp.ones((C3,), jnp.float32)
    b128 = jnp.zeros((C3,), jnp.float32)
    x_cl3 = jax.random.normal(keys[1], (2, 4, 4, C3), dtype=jnp.float32)
    y_cl3 = jax.block_until_ready(layer_norm(x_cl3, w128, b128, eps, "channels_last"))
    assert jnp.allclose(y_cl3, _reference(x_cl3, w128, b128, eps, "channels_last"),
                        atol=1e-5, rtol=1e-5)

    print("KERNEL_OK")
</pallas_src>

<mosaic_0001>
module attributes {stable_mosaic.version = 11 : i64} {
  func.func @_ln_cfirst_kernel(%arg0: i32, %arg1: i32, %arg2: memref<1x32x256xf32, #tpu.memory_space<vmem>>, %arg3: memref<32x1xf32, #tpu.memory_space<vmem>>, %arg4: memref<32x1xf32, #tpu.memory_space<vmem>>, %arg5: memref<1x32x256xf32, #tpu.memory_space<vmem>>) attributes {dimension_semantics = [#tpu.dimension_semantics<parallel>, #tpu.dimension_semantics<parallel>], iteration_bounds = array<i64: 2, 1>, scalar_prefetch = 0 : i64, scratch_operands = 0 : i64, tpu.core_type = #tpu.core_type<tc>, window_params = [{transform_indices = @transform_0, window_bounds = array<i64: 1, 32, 256>}, {pipeline_mode = #tpu.pipeline_mode<synchronous>, transform_indices = @transform_1, window_bounds = array<i64: 32, 1>}, {pipeline_mode = #tpu.pipeline_mode<synchronous>, transform_indices = @transform_2, window_bounds = array<i64: 32, 1>}, {transform_indices = @transform_3, window_bounds = array<i64: 1, 32, 256>}]} {
    %c0 = arith.constant 0 : index
    %c0_0 = arith.constant 0 : index
    %c0_1 = arith.constant 0 : index
    %0 = vector.load %arg2[%c0, %c0_0, %c0_1] : memref<1x32x256xf32, #tpu.memory_space<vmem>>, vector<1x32x256xf32>
    %1 = vector.shape_cast %0 : vector<1x32x256xf32> to vector<32x256xf32>
    %cst = arith.constant dense<0.000000e+00> : vector<256xf32>
    %2 = vector.multi_reduction <add>, %1, %cst [0] : vector<32x256xf32> to vector<256xf32>
    %3 = vector.shape_cast %2 : vector<256xf32> to vector<1x256xf32>
    %cst_2 = arith.constant 3.200000e+01 : f32
    %4 = vector.broadcast %cst_2 : f32 to vector<1x256xf32>
    %5 = arith.divf %3, %4 : vector<1x256xf32>
    %6 = vector.broadcast %5 : vector<1x256xf32> to vector<32x256xf32>
    %7 = arith.subf %1, %6 : vector<32x256xf32>
    %8 = arith.mulf %7, %7 : vector<32x256xf32>
    %cst_3 = arith.constant dense<0.000000e+00> : vector<256xf32>
    %9 = vector.multi_reduction <add>, %8, %cst_3 [0] : vector<32x256xf32> to vector<256xf32>
    %10 = vector.shape_cast %9 : vector<256xf32> to vector<1x256xf32>
    %cst_4 = arith.constant 3.200000e+01 : f32
    %11 = vector.broadcast %cst_4 : f32 to vector<1x256xf32>
    %12 = arith.divf %10, %11 : vector<1x256xf32>
    %cst_5 = arith.constant 9.99999997E-7 : f32
    %13 = vector.broadcast %cst_5 : f32 to vector<1x256xf32>
    %14 = arith.addf %12, %13 : vector<1x256xf32>
    %15 = math.rsqrt %14 : vector<1x256xf32>
    %16 = vector.broadcast %15 : vector<1x256xf32> to vector<32x256xf32>
    %17 = arith.mulf %7, %16 : vector<32x256xf32>
    %c0_6 = arith.constant 0 : index
    %c0_7 = arith.constant 0 : index
    %18 = vector.load %arg3[%c0_6, %c0_7] : memref<32x1xf32, #tpu.memory_space<vmem>>, vector<32x1xf32>
    %19 = vector.broadcast %18 : vector<32x1xf32> to vector<32x256xf32>
    %20 = arith.mulf %17, %19 : vector<32x256xf32>
    %c0_8 = arith.constant 0 : index
    %c0_9 = arith.constant 0 : index
    %21 = vector.load %arg4[%c0_8, %c0_9] : memref<32x1xf32, #tpu.memory_space<vmem>>, vector<32x1xf32>
    %22 = vector.broadcast %21 : vector<32x1xf32> to vector<32x256xf32>
    %23 = arith.addf %20, %22 : vector<32x256xf32>
    %c0_10 = arith.constant 0 : index
    %c0_11 = arith.constant 0 : index
    %c0_12 = arith.constant 0 : index
    %24 = vector.load %arg5[%c0_10, %c0_11, %c0_12] : memref<1x32x256xf32, #tpu.memory_space<vmem>>, vector<1x32x256xf32>
    %25 = vector.shape_cast %24 : vector<1x32x256xf32> to vector<32x256xf32>
    %26 = vector.shape_cast %23 : vector<32x256xf32> to vector<1x32x256xf32>
    tpu.vector_store %arg5[%c0_10, %c0_11, %c0_12], %26 {strides = array<i32>} : memref<1x32x256xf32, #tpu.memory_space<vmem>>, vector<1x32x256xf32>,
    return
  }
  func.func @transform_0(%arg0: i32, %arg1: i32) -> (i32, i32, i32) {
    %c0_i32 = arith.constant 0 : i32
    %c0_i32_0 = arith.constant 0 : i32
    return %arg0, %c0_i32, %arg1 : i32, i32, i32
  }
  func.func @transform_1(%arg0: i32, %arg1: i32) -> (i32, i32) {
    %c0_i32 = arith.constant 0 : i32
    %c0_i32_0 = arith.constant 0 : i32
    %c0_i32_1 = arith.constant 0 : i32
    return %c0_i32, %c0_i32_0 : i32, i32
  }
  func.func @transform_2(%arg0: i32, %arg1: i32) -> (i32, i32) {
    %c0_i32 = arith.constant 0 : i32
    %c0_i32_0 = arith.constant 0 : i32
    %c0_i32_1 = arith.constant 0 : i32
    return %c0_i32, %c0_i32_0 : i32, i32
  }
  func.func @transform_3(%arg0: i32, %arg1: i32) -> (i32, i32, i32) {
    %c0_i32 = arith.constant 0 : i32
    %c0_i32_0 = arith.constant 0 : i32
    return %arg0, %c0_i32, %arg1 : i32, i32, i32
  }
}

</mosaic_0001>

<llo_original>
// kernel: tpu_custom_call.1
$region0: #{tpu_custom_call.1}
  #allocation0 [shape = 'u32[]', space=smem, size = 0x4, offset = 0x4, fixed_abs, tag = 'smem constant byte address 0x4 - core index']
  #allocation1 [shape = 'u32[144,128]{1,0:T(1,128)}', space=vmem, size = 0x12000, scoped, tag = 'internal scratch']
  %s0 = inlined_call_operand.hbm [shape: f32[2,32,256], index: 0, kind: input, shape index: {}]
  %s1 = inlined_call_operand.vmem [shape: f32[32,1], index: 1, kind: input, shape index: {}]
  %s2 = inlined_call_operand.vmem [shape: f32[32,1], index: 2, kind: input, shape index: {}]
  %s3 = inlined_call_operand.hbm [shape: f32[2,32,256], index: 3, kind: output, shape index: {}]
  %s4 = sld [smem:[#allocation0]]
  $region49: #{tpu_custom_call.1} parent=0
    _
  %s6 = ssub.s32 1, %s4
  %s7 = scalar_select 0, %s6, %s4
  $region1: #{tpu_custom_call.1} parent=0
    #allocation2 [shape = 'u8[65536]{0}', space=vmem, size = 0x10000, scoped, tag = 'input window, operand 0']
    #allocation3 [shape = 's32[2]{0}', space=sflag, size = 0x8, scoped, tag = 'scoped memory for tpu_custom_call.1']
    #allocation4 [shape = 's32[2]{0}', space=sflag, size = 0x8, scoped, tag = 'scoped memory for tpu_custom_call.1']
    #allocation5 [shape = 'u8[65536]{0}', space=vmem, size = 0x10000, scoped, tag = 'output window, operand 0']
    %8 = vsyncpa [#allocation3], 0
    %s9 = scalar_lea.sflag [#allocation3], 1
    %10 = vsyncpa %s9, 0
    %11 = vsyncpa [#allocation4], 0
    %s12 = scalar_lea.sflag [#allocation4], 1
    %13 = vsyncpa %s12, 0
    loop: start=0, step=1, limit=4
    $region2: #{tpu_custom_call.1} parent=1 // loop_pre_header
      _
    $region3: #{tpu_custom_call.1} parent=1 // loop_header
      %s15 = sphi 0, %s19
      %p16 = scmp.ge.s32.totalorder %s15, 4
      %s22 = sphi 0, %s34
      %s23 = sphi 0, %s30
      %s24 = sphi 0, %s22
      %s25 = sphi 0, %s23
      %s26 = sphi 0, %s24
      %s27 = sphi 0, %s25
      %s39 = sphi 0, %s41
      %s42 = sphi 0, %s39
      %s43 = sphi 0, %s42
      %s59 = sphi 0, %s43
      %s63 = sphi 0, %s63
      %s65 = sphi 0, %s63
      %s66 = sphi 0, %s65
      %s80 = sphi 0, %s66
      %s84 = sphi 0, %s84
      %s86 = sphi 0, %s84
      %s87 = sphi 0, %s86
      %s101 = sphi 0, %s87
      %s109 = sphi 0, %s111
      %s112 = sphi 0, %s109
      %s113 = sphi 0, %s112
      %s129 = sphi 0, %s113
    $region4: #{tpu_custom_call.1} parent=1 // loop_header_branch
      %18 = sbr.rel (%p16) target = $region8
    $region5: #{tpu_custom_call.1} parent=1 // loop_body
      %s20 = ssub.s32 %s15, 1
      %s21 = ssub.s32 %s15, 2
      %s28 = sadd.s32 1, %s23
      %p29 = scmp.ge.s32.totalorder %s28, 1
      %s30 = scalar_select %p29, 0, %s28
      %s31 = sadd.s32 1, %s22
      %s32 = scalar_select %p29, %s31, %s22
      %p33 = scmp.ge.s32.totalorder %s32, 2
      %s34 = scalar_select %p33, 0, %s32
      %s35 = ssub.s32 %s22, %s34
      %s36 = ssub.s32 %s23, %s30
      %s37 = sor.u32 %s35, %s36
      %p38 = scmp.eq.s32.totalorder %s37, 0
      %s40 = sadd.s32 %s39, 1
      %s41 = scalar_select %p38, %s39, %s40
      %p44 = pneg %p38
      %p45 = scmp.eq.s32.totalorder %s15, 1
      %p46 = por %p44, %p45
      %p47 = scmp.ne.s32.totalorder %s39, %s42
      %p48 = scmp.eq.s32.totalorder %s15, 0
      %p49 = por %p47, %p48
      %p50 = scmp.ne.s32.totalorder %s39, %s42
      %p51 = scmp.eq.s32.totalorder %s20, 1
      %p52 = por %p50, %p51
      %p53 = scmp.ne.s32.totalorder %s42, %s43
      %p54 = scmp.eq.s32.totalorder %s20, 0
      %p55 = por %p53, %p54
      %p56 = scmp.ne.s32.totalorder %s42, %s43
      %p57 = scmp.eq.s32.totalorder %s21, 1
      %p58 = por %p56, %p57
      %p60 = scmp.ne.s32.totalorder %s43, %s59
      %p61 = scmp.eq.s32.totalorder %s21, 0
      %p62 = por %p60, %p61
      %s64 = sadd.s32 %s63, 1
      %p67 = scmp.eq.s32.totalorder %s15, 1
      %p68 = scmp.ne.s32.totalorder %s63, %s65
      %p69 = scmp.eq.s32.totalorder %s15, 0
      %p70 = por %p68, %p69
      %p71 = scmp.ne.s32.totalorder %s63, %s65
      %p72 = scmp.eq.s32.totalorder %s20, 1
      %p73 = por %p71, %p72
      %p74 = scmp.ne.s32.totalorder %s65, %s66
      %p75 = scmp.eq.s32.totalorder %s20, 0
      %p76 = por %p74, %p75
      %p77 = scmp.ne.s32.totalorder %s65, %s66
      %p78 = scmp.eq.s32.totalorder %s21, 1
      %p79 = por %p77, %p78
      %p81 = scmp.ne.s32.totalorder %s66, %s80
      %p82 = scmp.eq.s32.totalorder %s21, 0
      %p83 = por %p81, %p82
      %s85 = sadd.s32 %s84, 1
      %p88 = scmp.eq.s32.totalorder %s15, 1
      %p89 = scmp.ne.s32.totalorder %s84, %s86
      %p90 = scmp.eq.s32.totalorder %s15, 0
      %p91 = por %p89, %p90
      %p92 = scmp.ne.s32.totalorder %s84, %s86
      %p93 = scmp.eq.s32.totalorder %s20, 1
      %p94 = por %p92, %p93
      %p95 = scmp.ne.s32.totalorder %s86, %s87
      %p96 = scmp.eq.s32.totalorder %s20, 0
      %p97 = por %p95, %p96
      %p98 = scmp.ne.s32.totalorder %s86, %s87
      %p99 = scmp.eq.s32.totalorder %s21, 1
      %p100 = por %p98, %p99
      %p102 = scmp.ne.s32.totalorder %s87, %s101
      %p103 = scmp.eq.s32.totalorder %s21, 0
      %p104 = por %p102, %p103
      %s105 = ssub.s32 %s22, %s34
      %s106 = ssub.s32 %s23, %s30
      %s107 = sor.u32 %s105, %s106
      %p108 = scmp.eq.s32.totalorder %s107, 0
      %s110 = sadd.s32 %s109, 1
      %s111 = scalar_select %p108, %s109, %s110
      %p114 = pneg %p108
      %p115 = scmp.eq.s32.totalorder %s15, 1
      %p116 = por %p114, %p115
      %p117 = scmp.ne.s32.totalorder %s109, %s112
      %p118 = scmp.eq.s32.totalorder %s15, 0
      %p119 = por %p117, %p118
      %p120 = scmp.ne.s32.totalorder %s109, %s112
      %p121 = scmp.eq.s32.totalorder %s20, 1
      %p122 = por %p120, %p121
      %p123 = scmp.ne.s32.totalorder %s112, %s113
      %p124 = scmp.eq.s32.totalorder %s20, 0
      %p125 = por %p123, %p124
      %p126 = scmp.ne.s32.totalorder %s112, %s113
      %p127 = scmp.eq.s32.totalorder %s21, 1
      %p128 = por %p126, %p127
      %p130 = scmp.ne.s32.totalorder %s113, %s129
      %p131 = scmp.eq.s32.totalorder %s21, 0
      %p132 = por %p130, %p131
      %p133 = scmp.le.s32.totalorder 1, %s15
      %p134 = scmp.lt.s32.totalorder %s15, 3
      %p135 = pnand %p133, %p134
      %p136 = pneg %p135
      // Predicated region
      $region9: #{tpu_custom_call.1} parent=5 // pred_check
        _
      $region10: #{tpu_custom_call.1} parent=5 // pred_check_branch
        %138 = sbr.rel (%p135) target = $region12
      $region11: #{tpu_custom_call.1} parent=5 // pred_region
        %s139 = ssub.s32 %s15, 1
        // Predicated region
        $region13: #{tpu_custom_call.1} parent=11 // pred_check
          %p140 = pneg %p76
        $region14: #{tpu_custom_call.1} parent=11 // pred_check_branch
          %142 = sbr.rel (%p140) target = $region16
        $region15: #{tpu_custom_call.1} parent=11 // pred_region
          _
        $region16: #{tpu_custom_call.1} parent=11 // pred_fallthru
          _
        // Predicated region
        $region17: #{tpu_custom_call.1} parent=11 // pred_check
          %p143 = pneg %p97
        $region18: #{tpu_custom_call.1} parent=11 // pred_check_branch
          %145 = sbr.rel (%p143) target = $region20
        $region19: #{tpu_custom_call.1} parent=11 // pred_region
          _
        $region20: #{tpu_custom_call.1} parent=11 // pred_fallthru
          _
      $region12: #{tpu_custom_call.1} parent=5 // pred_fallthru
        _
      %p146 = scmp.lt.s32.totalorder %s15, 2
      // Predicated region
      $region21: #{tpu_custom_call.1} parent=5 // pred_check
        %p147 = pneg %p146
      $region22: #{tpu_custom_call.1} parent=5 // pred_check_branch
        %149 = sbr.rel (%p147) target = $region24
      $region23: #{tpu_custom_call.1} parent=5 // pred_region
        // Predicated region
        $region25: #{tpu_custom_call.1} parent=23 // pred_check
          %p150 = pneg %p49
        $region26: #{tpu_custom_call.1} parent=23 // pred_check_branch
          %152 = sbr.rel (%p150) target = $region28
        $region27: #{tpu_custom_call.1} parent=23 // pred_region
          %s153 = sand.u32 %s39, 1
          %s154 = scalar_lea.sflag [#allocation3], %s153
          %s155 = sand.u32 %s39, 1
          %s156 = smul.addr %s155, 64
          %s157 = scalar_lea.vmem [#allocation2], %s156
          %s158 = smul.u32 2, %s23
          %s160 = ssub.s32 1024, 1024
          %161 = vsyncadd %s154, %s160
          %s162 = smul.addr %s22, 8
          %s163 = sadd.s32 %s158, %s162
          %s164 = smul.addr %s163, 128
          %s165 = scalar_lea.hbm %s0, %s164
          %s166 = sshll.u32 %s157, 4
          %s167 = int_to_ptr.vmem [resolvable:$true] %s166
          %172 = dma.hbm_to_vmem [thread:$0]  %s165, 1024, %s167, %s154, 256, 256, 16
        $region28: #{tpu_custom_call.1} parent=23 // pred_fallthru
          _
      $region24: #{tpu_custom_call.1} parent=5 // pred_fallthru
        _
      %p173 = scmp.le.s32.totalorder 1, %s15
      %p174 = scmp.lt.s32.totalorder %s15, 3
      %p175 = pnand %p173, %p174
      %p176 = pneg %p175
      // Predicated region
      $region29: #{tpu_custom_call.1} parent=5 // pred_check
        _
      $region30: #{tpu_custom_call.1} parent=5 // pred_check_branch
        %178 = sbr.rel (%p175) target = $region32
      $region31: #{tpu_custom_call.1} parent=5 // pred_region
        %s179 = ssub.s32 %s15, 1
        %s180 = sand.u32 %s42, 1
        %s181 = scalar_lea.sflag [#allocation3], %s180
        %s182 = sand.u32 %s42, 1
        %s183 = smul.addr %s182, 64
        %s184 = scalar_lea.vmem [#allocation2], %s183
        // Predicated region
        $region33: #{tpu_custom_call.1} parent=31 // pred_check
          %p185 = pneg %p55
        $region34: #{tpu_custom_call.1} parent=31 // pred_check_branch
          %187 = sbr.rel (%p185) target = $region36
        $region35: #{tpu_custom_call.1} parent=31 // pred_region
          %188 = dma.done %s181, 1024
        $region36: #{tpu_custom_call.1} parent=31 // pred_fallthru
          _
        %s189 = sand.u32 %s42, 1
        %s190 = scalar_lea.sflag [#allocation3], %s189
        %s191 = sand.u32 %s42, 1
        %s192 = smul.addr %s191, 64
        %s193 = scalar_lea.vmem [#allocation2], %s192
        %p194 = pneg %p55
        %p195 = pneg %p52
        %p196 = pneg %p76
        %p197 = pneg %p73
        %p198 = pneg %p97
        %p199 = pneg %p94
        %p200 = pneg %p125
        %p201 = pneg %p122
        %s202 = sand.u32 %s112, 1
        %s203 = scalar_lea.sflag [#allocation4], %s202
        %s204 = sand.u32 %s112, 1
        %s205 = smul.addr %s204, 64
        %s206 = scalar_lea.vmem [#allocation5], %s205
        %s207 = smul.u32 2, %s25
        %s208 = smul.u32 2, %s25
        %v209 = vld [vmem:[%s184] sm:$0xff]
        %v210 = vld [vmem:[%s184 + $0x8] sm:$0xff]
        %v211 = vld [vmem:[%s184 + $0x10] sm:$0xff]
        %v212 = vld [vmem:[%s184 + $0x18] sm:$0xff]
        %v213 = vld [vmem:[%s184 + $0x20] sm:$0xff]
        %v214 = vld [vmem:[%s184 + $0x28] sm:$0xff]
        %v215 = vld [vmem:[%s184 + $0x30] sm:$0xff]
        %v216 = vld [vmem:[%s184 + $0x38] sm:$0xff]
        %v217 = vadd.f32 %v209, %v211
        %v218 = vadd.f32 %v217, %v213
        %v219 = vadd.f32 %v218, %v215
        %v220 = vrot.slane %v219, 4
        %v221 = vadd.f32 %v219, %v220
        %v222 = vrot.slane %v221, 2
        %v223 = vadd.f32 %v221, %v222
        %v224 = vrot.slane %v223, 1
        %v225 = vadd.f32 %v223, %v224
        %v226 = vadd.f32 %v210, %v212
        %v227 = vadd.f32 %v226, %v214
        %v228 = vadd.f32 %v227, %v216
        %v229 = vrot.slane %v228, 4
        %v230 = vadd.f32 %v228, %v229
        %v231 = vrot.slane %v230, 2
        %v232 = vadd.f32 %v230, %v231
        %v233 = vrot.slane %v232, 1
        %v234 = vadd.f32 %v232, %v233
        %v235 = vrcp.pop 32.0
        %v236 = vmul.f32 %v225, %v235
        %v237 = vmul.f32 %v234, %v235
        %v238 = vsub.f32 %v209, %v236
        %v239 = vsub.f32 %v210, %v237
        %v240 = vsub.f32 %v211, %v236
        %v241 = vsub.f32 %v212, %v237
        %v242 = vsub.f32 %v213, %v236
        %v243 = vsub.f32 %v214, %v237
        %v244 = vsub.f32 %v215, %v236
        %v245 = vsub.f32 %v216, %v237
        %v246 = vmul.f32 %v238, %v238
        %v247 = vmul.f32 %v239, %v239
        %v248 = vmul.f32 %v240, %v240
        %v249 = vmul.f32 %v241, %v241
        %v250 = vmul.f32 %v242, %v242
        %v251 = vmul.f32 %v243, %v243
        %v252 = vmul.f32 %v244, %v244
        %v253 = vmul.f32 %v245, %v245
        %v254 = vadd.f32 %v246, %v248
        %v255 = vadd.f32 %v254, %v250
        %v256 = vadd.f32 %v255, %v252
        %v257 = vrot.slane %v256, 4
        %v258 = vadd.f32 %v256, %v257
        %v259 = vrot.slane %v258, 2
        %v260 = vadd.f32 %v258, %v259
        %v261 = vrot.slane %v260, 1
        %v262 = vadd.f32 %v260, %v261
        %v263 = vadd.f32 %v247, %v249
        %v264 = vadd.f32 %v263, %v251
        %v265 = vadd.f32 %v264, %v253
        %v266 = vrot.slane %v265, 4
        %v267 = vadd.f32 %v265, %v266
        %v268 = vrot.slane %v267, 2
        %v269 = vadd.f32 %v267, %v268
        %v270 = vrot.slane %v269, 1
        %v271 = vadd.f32 %v269, %v270
        %v272 = vmul.f32 %v262, %v235
        %v273 = vmul.f32 %v271, %v235
        %v274 = vadd.f32 %v272, 1e-06
        %v275 = vadd.f32 %v273, 1e-06
        %v276 = vrsqrt.pop %v274
        %v277 = vrsqrt.pop %v275
        %v278 = vmul.f32 %v238, %v276
        %v279 = vmul.f32 %v239, %v277
        %v280 = vmul.f32 %v240, %v276
        %v281 = vmul.f32 %v241, %v277
        %v282 = vmul.f32 %v242, %v276
        %v283 = vmul.f32 %v243, %v277
        %v284 = vmul.f32 %v244, %v276
        %v285 = vmul.f32 %v245, %v277
        %v286 = vld [vmem:[%s1] sm:$0xff]
        %v287 = vld [vmem:[%s1 + $0x8] sm:$0xff]
        %v288 = vld [vmem:[%s1 + $0x10] sm:$0xff]
        %v289 = vld [vmem:[%s1 + $0x18] sm:$0xff]
        %291 = vset.pattern.permute.xlu0 0
        %292 = vperm.xlu0 %291, %v286
        %v293 = vpop.permute.xlu0 %292
        %296 = vset.pattern.permute.xlu0 0
        %297 = vperm.xlu0 %296, %v287
        %v298 = vpop.permute.xlu0 %297
        %301 = vset.pattern.permute.xlu0 0
        %302 = vperm.xlu0 %301, %v288
        %v303 = vpop.permute.xlu0 %302
        %306 = vset.pattern.permute.xlu0 0
        %307 = vperm.xlu0 %306, %v289
        %v308 = vpop.permute.xlu0 %307
        %v310 = vmul.f32 %v278, %v293
        %v311 = vmul.f32 %v279, %v293
        %v312 = vmul.f32 %v280, %v298
        %v313 = vmul.f32 %v281, %v298
        %v314 = vmul.f32 %v282, %v303
        %v315 = vmul.f32 %v283, %v303
        %v316 = vmul.f32 %v284, %v308
        %v317 = vmul.f32 %v285, %v308
        %v318 = vld [vmem:[%s2] sm:$0xff]
        %v319 = vld [vmem:[%s2 + $0x8] sm:$0xff]
        %v320 = vld [vmem:[%s2 + $0x10] sm:$0xff]
        %v321 = vld [vmem:[%s2 + $0x18] sm:$0xff]
        %323 = vset.pattern.permute.xlu0 0
        %324 = vperm.xlu0 %323, %v318
        %v325 = vpop.permute.xlu0 %324
        %328 = vset.pattern.permute.xlu0 0
        %329 = vperm.xlu0 %328, %v319
        %v330 = vpop.permute.xlu0 %329
        %333 = vset.pattern.permute.xlu0 0
        %334 = vperm.xlu0 %333, %v320
        %v335 = vpop.permute.xlu0 %334
        %338 = vset.pattern.permute.xlu0 0
        %339 = vperm.xlu0 %338, %v321
        %v340 = vpop.permute.xlu0 %339
        %v342 = vadd.f32 %v310, %v325
        %v343 = vadd.f32 %v311, %v325
        %v344 = vadd.f32 %v312, %v330
        %v345 = vadd.f32 %v313, %v330
        %v346 = vadd.f32 %v314, %v335
        %v347 = vadd.f32 %v315, %v335
        %v348 = vadd.f32 %v316, %v340
        %v349 = vadd.f32 %v317, %v340
        %350 = vst [vmem:[%s206] sm:$0xff] %v342
        %351 = vst [vmem:[%s206 + $0x8] sm:$0xff] %v343
        %352 = vst [vmem:[%s206 + $0x10] sm:$0xff] %v344
        %353 = vst [vmem:[%s206 + $0x18] sm:$0xff] %v345
        %354 = vst [vmem:[%s206 + $0x20] sm:$0xff] %v346
        %355 = vst [vmem:[%s206 + $0x28] sm:$0xff] %v347
        %356 = vst [vmem:[%s206 + $0x30] sm:$0xff] %v348
        %357 = vst [vmem:[%s206 + $0x38] sm:$0xff] %v349
        %s358 = sand.u32 %s112, 1
        %s359 = scalar_lea.sflag [#allocation4], %s358
        %s360 = sand.u32 %s112, 1
        %s361 = smul.addr %s360, 64
        %s362 = scalar_lea.vmem [#allocation5], %s361
        // Predicated region
        $region37: #{tpu_custom_call.1} parent=31 // pred_check
          %p363 = pneg %p122
        $region38: #{tpu_custom_call.1} parent=31 // pred_check_branch
          %365 = sbr.rel (%p363) target = $region40
        $region39: #{tpu_custom_call.1} parent=31 // pred_region
          %s366 = smul.u32 2, %s25
          %s368 = ssub.s32 1024, 1024
          %369 = vsyncadd %s359, %s368
          %s370 = smul.addr %s24, 8
          %s371 = sadd.s32 %s366, %s370
          %s372 = smul.addr %s371, 128
          %s373 = scalar_lea.hbm %s3, %s372
          %s374 = sshll.u32 %s362, 4
          %s375 = int_to_ptr.vmem [resolvable:$true] %s374
          %380 = dma.vmem_to_hbm [thread:$0]  %s375, 1024, %s373, %s359, 256, 256, 16
        $region40: #{tpu_custom_call.1} parent=31 // pred_fallthru
          _
      $region32: #{tpu_custom_call.1} parent=5 // pred_fallthru
        _
      %p381 = scmp.le.s32.totalorder 2, %s15
      // Predicated region
      $region41: #{tpu_custom_call.1} parent=5 // pred_check
        %p382 = pneg %p381
      $region42: #{tpu_custom_call.1} parent=5 // pred_check_branch
        %384 = sbr.rel (%p382) target = $region44
      $region43: #{tpu_custom_call.1} parent=5 // pred_region
        %s385 = ssub.s32 %s15, 2
        // Predicated region
        $region45: #{tpu_custom_call.1} parent=43 // pred_check
          %p386 = pneg %p128
        $region46: #{tpu_custom_call.1} parent=43 // pred_check_branch
          %388 = sbr.rel (%p386) target = $region48
        $region47: #{tpu_custom_call.1} parent=43 // pred_region
          %s389 = sand.u32 %s113, 1
          %s390 = scalar_lea.sflag [#allocation4], %s389
          %s391 = sand.u32 %s113, 1
          %s392 = smul.addr %s391, 64
          %s393 = scalar_lea.vmem [#allocation5], %s392
          %394 = dma.done %s390, 1024
        $region48: #{tpu_custom_call.1} parent=43 // pred_fallthru
          _
      $region44: #{tpu_custom_call.1} parent=5 // pred_fallthru
        _
    $region6: #{tpu_custom_call.1} parent=1 // loop_footer
      %s19 = sadd.s32 1, %s15
    $region7: #{tpu_custom_call.1} parent=1 // loop_footer_branch
      %14 = sbr.rel target = $region3
    $region8: #{tpu_custom_call.1} parent=1 // loop_exit
      _
    %395 = vsyncpa [#allocation3], 1
    %s396 = scalar_lea.sflag [#allocation3], 1
    %397 = vsyncpa %s396, 1
    %398 = vsyncpa [#allocation4], 1
    %s399 = scalar_lea.sflag [#allocation4], 1
    %400 = vsyncpa %s399, 1

</llo_original>
